<compile_context>
chip_gen: v6e
topology: v6e:2x2x1
jax: 0.10.0
libtpu: 0.0.40
codegen_flags: <defaults>
</compile_context>

<pallas_src>
import functools

import jax
import jax.numpy as jnp
from jax.experimental import pallas as pl
from jax.experimental.pallas import tpu as pltpu


_LANE = 128
_SUBLANE = 8
# VMEM budget for the double-buffered HBM<->VMEM pipeline blocks.  Kept well
# under the explicit vmem_limit below so it is safe on v7x (64 MiB physical).
_BLOCK_VMEM_BUDGET = 24 * 1024 * 1024
_VMEM_LIMIT_BYTES = 48 * 1024 * 1024
# Max static unroll of the time axis in the lane-dense kernel.
_MAX_UNROLL_T = 64


# ----------------------------------------------------------------------------
# Kernels
# ----------------------------------------------------------------------------
def _scaler_kernel_lane_dense(data_ref, obs_ref, scaled_ref, scale_ref, *, T, C):
    """Lane-dense variant: big tensors are presented as (tn, T*C) blocks.

    data_ref, obs_ref, scaled_ref : (tn, T*C) VMEM blocks (lane-dense)
    scale_ref                     : (tn, C)   VMEM block
    """
    data = data_ref[...]
    # Mask may arrive in a narrow dtype (bf16/int8) to cut HBM reads; the
    # 0/1 values are exact, upcast once (VPU work, hidden under DMA).
    obs = obs_ref[...].astype(jnp.float32)

    prod = jnp.abs(data) * obs

    # Masked reduction over time: channel c lives at lanes c, c+C, c+2C, ...
    # T is small & static here, so a fully unrolled lane-slice accumulation.
    num = prod[:, 0:C]
    den = obs[:, 0:C]
    for t in range(1, T):
        num = num + prod[:, t * C:(t + 1) * C]
        den = den + obs[:, t * C:(t + 1) * C]

    scale = num / jnp.maximum(den, 1.0)           # tiny (tn, C) divide
    scale = jnp.where(scale == 0.0, 1.0, scale)   # avoid /0 in the scaling step
    scale_ref[...] = scale.astype(scale_ref.dtype)

    # Scale the big tensor with a single vmul: exact inverse computed on the
    # tiny (tn, C) tensor, replicated along lanes to match the (tn, T*C) slab.
    inv = pl.reciprocal(scale, approx=False)
    inv_tiled = jnp.concatenate([inv] * T, axis=1)          # (tn, T*C)
    scaled_ref[...] = (data * inv_tiled).astype(scaled_ref.dtype)


def _scaler_kernel_natural(data_ref, obs_ref, scaled_ref, scale_ref):
    """Natural-layout variant: (tn, T, C) blocks.

    Used when C is already lane-dense (C % 128 == 0) or T is too long to
    unroll in the lane-dense kernel.
    """
    data = data_ref[...]
    obs = obs_ref[...].astype(jnp.float32)

    num = jnp.sum(jnp.abs(data) * obs, axis=1)    # (tn, C)
    den = jnp.sum(obs, axis=1)                    # (tn, C)
    scale = num / jnp.maximum(den, 1.0)
    scale = jnp.where(scale == 0.0, 1.0, scale)
    scale_ref[...] = scale.astype(scale_ref.dtype)

    inv = pl.reciprocal(scale, approx=False)      # tiny tensor, exact
    scaled_ref[...] = (data * inv[:, None, :]).astype(scaled_ref.dtype)


# ----------------------------------------------------------------------------
# Wrapper
# ----------------------------------------------------------------------------
def _choose_batch_tile(n, bytes_per_batch_row):
    """Largest batch tile whose double-buffered blocks fit the VMEM budget."""
    max_rows = max(1, _BLOCK_VMEM_BUDGET // (2 * bytes_per_batch_row))
    if max_rows >= n:
        return n
    return max(_SUBLANE, (max_rows // _SUBLANE) * _SUBLANE)


def scaler_forward(data, observed_indicator, *, keepdim=False, time_first=True):
    """Pallas-backed equivalent of Scaler.forward (time_first=True layout).

    data:               (N, T, C) float32
    observed_indicator: (N, T, C) 0/1 mask, any float/int dtype (bf16/int8 ok)
    returns (scaled_data (N,T,C), scale (N,C) or (N,1,C) if keepdim)
    """
    # TODO(synk): only the (N, T, C) time_first=True layout is implemented.
    assert time_first, "kernel implemented for the (N, T, C) time_first layout"
    N, T, C = data.shape
    out_dtype = data.dtype

    itemsize_data = jnp.dtype(data.dtype).itemsize
    itemsize_obs = jnp.dtype(observed_indicator.dtype).itemsize
    # data in + mask in + scaled out, per batch row.
    bytes_per_row = T * C * (2 * itemsize_data + itemsize_obs)
    tn = _choose_batch_tile(N, bytes_per_row)
    grid = (pl.cdiv(N, tn),)

    # scale output: (N, C), or (N, 1, C) emitted directly by the kernel.
    if keepdim:
        scale_shape = (N, 1, C)
        scale_spec = pl.BlockSpec((tn, None, C), lambda i: (i, 0, 0))
    else:
        scale_shape = (N, C)
        scale_spec = pl.BlockSpec((tn, C), lambda i: (i, 0))

    compiler_params = pltpu.CompilerParams(
        dimension_semantics=("parallel",),   # megacore split on v7x
        vmem_limit_bytes=_VMEM_LIMIT_BYTES,
    )

    def _call_lane_dense():
        data2d = data.reshape(N, T * C)              # contiguous -> free
        obs2d = observed_indicator.reshape(N, T * C)
        kernel = functools.partial(_scaler_kernel_lane_dense, T=T, C=C)
        scaled2d, scale = pl.pallas_call(
            kernel,
            grid=grid,
            out_shape=(
                jax.ShapeDtypeStruct((N, T * C), out_dtype),
                jax.ShapeDtypeStruct(scale_shape, out_dtype),
            ),
            in_specs=[
                pl.BlockSpec((tn, T * C), lambda i: (i, 0)),
                pl.BlockSpec((tn, T * C), lambda i: (i, 0)),
            ],
            out_specs=(
                pl.BlockSpec((tn, T * C), lambda i: (i, 0)),
                scale_spec,
            ),
            compiler_params=compiler_params,
        )(data2d, obs2d)
        return scaled2d.reshape(N, T, C), scale

    def _call_natural():
        # TODO(synk): for extremely long T where even a (8, T, C) block blows
        # the VMEM budget, a T-tiled two-pass (reduce + scale) kernel is needed.
        return pl.pallas_call(
            _scaler_kernel_natural,
            grid=grid,
            out_shape=(
                jax.ShapeDtypeStruct((N, T, C), out_dtype),
                jax.ShapeDtypeStruct(scale_shape, out_dtype),
            ),
            in_specs=[
                pl.BlockSpec((tn, T, C), lambda i: (i, 0, 0)),
                pl.BlockSpec((tn, T, C), lambda i: (i, 0, 0)),
            ],
            out_specs=(
                pl.BlockSpec((tn, T, C), lambda i: (i, 0, 0)),
                scale_spec,
            ),
            compiler_params=compiler_params,
        )(data, observed_indicator)

    use_lane_dense = (C % _LANE != 0) and (T * C >= _LANE) and (T <= _MAX_UNROLL_T)
    if use_lane_dense:
        try:
            return _call_lane_dense()
        except Exception:
            # Conservative fallback: if the lane-dense lowering is unavailable
            # on this backend/version, use the natural-layout kernel.
            pass
    return _call_natural()


# ----------------------------------------------------------------------------
# Pure-JAX reference (mirrors the PyTorch forward with the mean-abs scale)
# ----------------------------------------------------------------------------
def _reference(data, obs, keepdim=False):
    obs = obs.astype(jnp.float32)
    num = jnp.sum(jnp.abs(data) * obs, axis=1)
    den = jnp.sum(obs, axis=1)
    scale = num / jnp.maximum(den, 1.0)
    scale = jnp.where(scale == 0.0, 1.0, scale)
    scaled = data / scale[:, None, :]
    if keepdim:
        scale = scale[:, None, :]
    return scaled, scale


if __name__ == "__main__":
    key = jax.random.PRNGKey(0)
    k1, k2, k3, k4 = jax.random.split(key, 4)

    # Case 1: lane-sparse channels (C < 128) -> lane-dense 2D kernel path.
    # Mask passed as bf16 (exact 0/1) to cut HBM read traffic.
    N, T, C = 16, 8, 32
    data = jax.random.normal(k1, (N, T, C), dtype=jnp.float32)
    observed = (jax.random.uniform(k2, (N, T, C)) > 0.2).astype(jnp.bfloat16)

    scaled, scale = scaler_forward(data, observed, keepdim=False)
    jax.block_until_ready((scaled, scale))
    ref_scaled, ref_scale = _reference(data, observed, keepdim=False)
    assert scaled.shape == (N, T, C)
    assert scale.shape == (N, C)
    assert jnp.allclose(scaled, ref_scaled, atol=1e-5, rtol=1e-5)
    assert jnp.allclose(scale, ref_scale, atol=1e-5, rtol=1e-5)

    # keepdim=True: scale emitted directly as (N, 1, C) by the kernel.
    scaled_k, scale_k = scaler_forward(data, observed, keepdim=True)
    jax.block_until_ready((scaled_k, scale_k))
    ref_scaled_k, ref_scale_k = _reference(data, observed, keepdim=True)
    assert scale_k.shape == (N, 1, C)
    assert jnp.allclose(scaled_k, ref_scaled_k, atol=1e-5, rtol=1e-5)
    assert jnp.allclose(scale_k, ref_scale_k, atol=1e-5, rtol=1e-5)

    # Case 2: lane-dense channels (C % 128 == 0) -> natural (N, T, C) path.
    N2, T2, C2 = 8, 8, 128
    data2 = jax.random.normal(k3, (N2, T2, C2), dtype=jnp.float32)
    observed2 = (jax.random.uniform(k4, (N2, T2, C2)) > 0.2).astype(jnp.float32)
    scaled2, scale2 = scaler_forward(data2, observed2, keepdim=False)
    jax.block_until_ready((scaled2, scale2))
    ref_scaled2, ref_scale2 = _reference(data2, observed2, keepdim=False)
    assert scaled2.shape == (N2, T2, C2) and scale2.shape == (N2, C2)
    assert jnp.allclose(scaled2, ref_scaled2, atol=1e-5, rtol=1e-5)
    assert jnp.allclose(scale2, ref_scale2, atol=1e-5, rtol=1e-5)

    print("KERNEL_OK")
</pallas_src>

<mosaic_0001>
module attributes {stable_mosaic.version = 11 : i64} {
  func.func @_scaler_kernel_lane_dense(%arg0: i32, %arg1: memref<16x256xf32, #tpu.memory_space<vmem>>, %arg2: memref<16x256xbf16, #tpu.memory_space<vmem>>, %arg3: memref<16x256xf32, #tpu.memory_space<vmem>>, %arg4: memref<16x32xf32, #tpu.memory_space<vmem>>) attributes {dimension_semantics = [#tpu.dimension_semantics<parallel>], iteration_bounds = array<i64: 1>, scalar_prefetch = 0 : i64, scratch_operands = 0 : i64, tpu.core_type = #tpu.core_type<tc>, window_params = [{transform_indices = @transform_0, window_bounds = array<i64: 16, 256>}, {transform_indices = @transform_1, window_bounds = array<i64: 16, 256>}, {transform_indices = @transform_2, window_bounds = array<i64: 16, 256>}, {transform_indices = @transform_3, window_bounds = array<i64: 16, 32>}]} {
    %c0 = arith.constant 0 : index
    %c0_0 = arith.constant 0 : index
    %0 = vector.load %arg1[%c0, %c0_0] : memref<16x256xf32, #tpu.memory_space<vmem>>, vector<16x256xf32>
    %c0_1 = arith.constant 0 : index
    %c0_2 = arith.constant 0 : index
    %1 = vector.load %arg2[%c0_1, %c0_2] : memref<16x256xbf16, #tpu.memory_space<vmem>>, vector<16x256xbf16>
    %2 = arith.extf %1 : vector<16x256xbf16> to vector<16x256xf32>
    %3 = math.absf %0 : vector<16x256xf32>
    %4 = arith.mulf %3, %2 : vector<16x256xf32>
    %5 = vector.extract_strided_slice %4 {offsets = [0, 0], sizes = [16, 32], strides = [1, 1]} : vector<16x256xf32> to vector<16x32xf32>
    %6 = vector.extract_strided_slice %2 {offsets = [0, 0], sizes = [16, 32], strides = [1, 1]} : vector<16x256xf32> to vector<16x32xf32>
    %7 = vector.extract_strided_slice %4 {offsets = [0, 32], sizes = [16, 32], strides = [1, 1]} : vector<16x256xf32> to vector<16x32xf32>
    %8 = arith.addf %5, %7 : vector<16x32xf32>
    %9 = vector.extract_strided_slice %2 {offsets = [0, 32], sizes = [16, 32], strides = [1, 1]} : vector<16x256xf32> to vector<16x32xf32>
    %10 = arith.addf %6, %9 : vector<16x32xf32>
    %11 = vector.extract_strided_slice %4 {offsets = [0, 64], sizes = [16, 32], strides = [1, 1]} : vector<16x256xf32> to vector<16x32xf32>
    %12 = arith.addf %8, %11 : vector<16x32xf32>
    %13 = vector.extract_strided_slice %2 {offsets = [0, 64], sizes = [16, 32], strides = [1, 1]} : vector<16x256xf32> to vector<16x32xf32>
    %14 = arith.addf %10, %13 : vector<16x32xf32>
    %15 = vector.extract_strided_slice %4 {offsets = [0, 96], sizes = [16, 32], strides = [1, 1]} : vector<16x256xf32> to vector<16x32xf32>
    %16 = arith.addf %12, %15 : vector<16x32xf32>
    %17 = vector.extract_strided_slice %2 {offsets = [0, 96], sizes = [16, 32], strides = [1, 1]} : vector<16x256xf32> to vector<16x32xf32>
    %18 = arith.addf %14, %17 : vector<16x32xf32>
    %19 = vector.extract_strided_slice %4 {offsets = [0, 128], sizes = [16, 32], strides = [1, 1]} : vector<16x256xf32> to vector<16x32xf32>
    %20 = arith.addf %16, %19 : vector<16x32xf32>
    %21 = vector.extract_strided_slice %2 {offsets = [0, 128], sizes = [16, 32], strides = [1, 1]} : vector<16x256xf32> to vector<16x32xf32>
    %22 = arith.addf %18, %21 : vector<16x32xf32>
    %23 = vector.extract_strided_slice %4 {offsets = [0, 160], sizes = [16, 32], strides = [1, 1]} : vector<16x256xf32> to vector<16x32xf32>
    %24 = arith.addf %20, %23 : vector<16x32xf32>
    %25 = vector.extract_strided_slice %2 {offsets = [0, 160], sizes = [16, 32], strides = [1, 1]} : vector<16x256xf32> to vector<16x32xf32>
    %26 = arith.addf %22, %25 : vector<16x32xf32>
    %27 = vector.extract_strided_slice %4 {offsets = [0, 192], sizes = [16, 32], strides = [1, 1]} : vector<16x256xf32> to vector<16x32xf32>
    %28 = arith.addf %24, %27 : vector<16x32xf32>
    %29 = vector.extract_strided_slice %2 {offsets = [0, 192], sizes = [16, 32], strides = [1, 1]} : vector<16x256xf32> to vector<16x32xf32>
    %30 = arith.addf %26, %29 : vector<16x32xf32>
    %31 = vector.extract_strided_slice %4 {offsets = [0, 224], sizes = [16, 32], strides = [1, 1]} : vector<16x256xf32> to vector<16x32xf32>
    %32 = arith.addf %28, %31 : vector<16x32xf32>
    %33 = vector.extract_strided_slice %2 {offsets = [0, 224], sizes = [16, 32], strides = [1, 1]} : vector<16x256xf32> to vector<16x32xf32>
    %34 = arith.addf %30, %33 : vector<16x32xf32>
    %cst = arith.constant 1.000000e+00 : f32
    %35 = vector.broadcast %cst : f32 to vector<16x32xf32>
    %36 = arith.maximumf %34, %35 : vector<16x32xf32>
    %37 = arith.divf %32, %36 : vector<16x32xf32>
    %cst_3 = arith.constant 0.000000e+00 : f32
    %38 = vector.broadcast %cst_3 : f32 to vector<16x32xf32>
    %39 = arith.cmpf oeq, %37, %38 : vector<16x32xf32>
    %cst_4 = arith.constant 1.000000e+00 : f32
    %40 = vector.broadcast %cst_4 : f32 to vector<16x32xf32>
    %41 = arith.select %39, %40, %37 : vector<16x32xi1>, vector<16x32xf32>
    %c0_5 = arith.constant 0 : index
    %c0_6 = arith.constant 0 : index
    %42 = vector.load %arg4[%c0_5, %c0_6] : memref<16x32xf32, #tpu.memory_space<vmem>>, vector<16x32xf32>
    tpu.vector_store %arg4[%c0_5, %c0_6], %41 {strides = array<i32>} : memref<16x32xf32, #tpu.memory_space<vmem>>, vector<16x32xf32>,
    %43 = tpu.reciprocal %41 : vector<16x32xf32> -> vector<16x32xf32>
    %44 = tpu.concatenate %43, %43, %43, %43, %43, %43, %43, %43 in 1 : vector<16x32xf32>, vector<16x32xf32>, vector<16x32xf32>, vector<16x32xf32>, vector<16x32xf32>, vector<16x32xf32>, vector<16x32xf32>, vector<16x32xf32> -> vector<16x256xf32>
    %45 = arith.mulf %0, %44 : vector<16x256xf32>
    %c0_7 = arith.constant 0 : index
    %c0_8 = arith.constant 0 : index
    %46 = vector.load %arg3[%c0_7, %c0_8] : memref<16x256xf32, #tpu.memory_space<vmem>>, vector<16x256xf32>
    tpu.vector_store %arg3[%c0_7, %c0_8], %45 {strides = array<i32>} : memref<16x256xf32, #tpu.memory_space<vmem>>, vector<16x256xf32>,
    return
  }
  func.func @transform_0(%arg0: i32) -> (i32, i32) {
    %c0_i32 = arith.constant 0 : i32
    %c0_i32_0 = arith.constant 0 : i32
    return %arg0, %c0_i32 : i32, i32
  }
  func.func @transform_1(%arg0: i32) -> (i32, i32) {
    %c0_i32 = arith.constant 0 : i32
    %c0_i32_0 = arith.constant 0 : i32
    return %arg0, %c0_i32 : i32, i32
  }
  func.func @transform_2(%arg0: i32) -> (i32, i32) {
    %c0_i32 = arith.constant 0 : i32
    %c0_i32_0 = arith.constant 0 : i32
    return %arg0, %c0_i32 : i32, i32
  }
  func.func @transform_3(%arg0: i32) -> (i32, i32) {
    %c0_i32 = arith.constant 0 : i32
    %c0_i32_0 = arith.constant 0 : i32
    return %arg0, %c0_i32 : i32, i32
  }
}

module attributes {stable_mosaic.version = 11 : i64} {
  func.func @_scaler_kernel_natural(%arg0: i32, %arg1: memref<16x8x32xf32, #tpu.memory_space<vmem>>, %arg2: memref<16x8x32xbf16, #tpu.memory_space<vmem>>, %arg3: memref<16x8x32xf32, #tpu.memory_space<vmem>>, %arg4: memref<16x32xf32, #tpu.memory_space<vmem>>) attributes {dimension_semantics = [#tpu.dimension_semantics<parallel>], iteration_bounds = array<i64: 1>, scalar_prefetch = 0 : i64, scratch_operands = 0 : i64, tpu.core_type = #tpu.core_type<tc>, window_params = [{transform_indices = @transform_0, window_bounds = array<i64: 16, 8, 32>}, {transform_indices = @transform_1, window_bounds = array<i64: 16, 8, 32>}, {transform_indices = @transform_2, window_bounds = array<i64: 16, 8, 32>}, {transform_indices = @transform_3, window_bounds = array<i64: 16, 32>}]} {
    %c0 = arith.constant 0 : index
    %c0_0 = arith.constant 0 : index
    %c0_1 = arith.constant 0 : index
    %0 = vector.load %arg1[%c0, %c0_0, %c0_1] : memref<16x8x32xf32, #tpu.memory_space<vmem>>, vector<16x8x32xf32>
    %c0_2 = arith.constant 0 : index
    %c0_3 = arith.constant 0 : index
    %c0_4 = arith.constant 0 : index
    %1 = vector.load %arg2[%c0_2, %c0_3, %c0_4] : memref<16x8x32xbf16, #tpu.memory_space<vmem>>, vector<16x8x32xbf16>
    %2 = arith.extf %1 : vector<16x8x32xbf16> to vector<16x8x32xf32>
    %3 = math.absf %0 : vector<16x8x32xf32>
    %4 = arith.mulf %3, %2 : vector<16x8x32xf32>
    %cst = arith.constant dense<0.000000e+00> : vector<16x32xf32>
    %5 = vector.multi_reduction <add>, %4, %cst [1] : vector<16x8x32xf32> to vector<16x32xf32>
    %cst_5 = arith.constant dense<0.000000e+00> : vector<16x32xf32>
    %6 = vector.multi_reduction <add>, %2, %cst_5 [1] : vector<16x8x32xf32> to vector<16x32xf32>
    %cst_6 = arith.constant 1.000000e+00 : f32
    %7 = vector.broadcast %cst_6 : f32 to vector<16x32xf32>
    %8 = arith.maximumf %6, %7 : vector<16x32xf32>
    %9 = arith.divf %5, %8 : vector<16x32xf32>
    %cst_7 = arith.constant 0.000000e+00 : f32
    %10 = vector.broadcast %cst_7 : f32 to vector<16x32xf32>
    %11 = arith.cmpf oeq, %9, %10 : vector<16x32xf32>
    %cst_8 = arith.constant 1.000000e+00 : f32
    %12 = vector.broadcast %cst_8 : f32 to vector<16x32xf32>
    %13 = arith.select %11, %12, %9 : vector<16x32xi1>, vector<16x32xf32>
    %c0_9 = arith.constant 0 : index
    %c0_10 = arith.constant 0 : index
    %14 = vector.load %arg4[%c0_9, %c0_10] : memref<16x32xf32, #tpu.memory_space<vmem>>, vector<16x32xf32>
    tpu.vector_store %arg4[%c0_9, %c0_10], %13 {strides = array<i32>} : memref<16x32xf32, #tpu.memory_space<vmem>>, vector<16x32xf32>,
    %15 = tpu.reciprocal %13 : vector<16x32xf32> -> vector<16x32xf32>
    %16 = vector.shape_cast %15 : vector<16x32xf32> to vector<16x1x32xf32>
    %17 = vector.broadcast %16 : vector<16x1x32xf32> to vector<16x8x32xf32>
    %18 = arith.mulf %0, %17 : vector<16x8x32xf32>
    %c0_11 = arith.constant 0 : index
    %c0_12 = arith.constant 0 : index
    %c0_13 = arith.constant 0 : index
    %19 = vector.load %arg3[%c0_11, %c0_12, %c0_13] : memref<16x8x32xf32, #tpu.memory_space<vmem>>, vector<16x8x32xf32>
    tpu.vector_store %arg3[%c0_11, %c0_12, %c0_13], %18 {strides = array<i32>} : memref<16x8x32xf32, #tpu.memory_space<vmem>>, vector<16x8x32xf32>,
    return
  }
  func.func @transform_0(%arg0: i32) -> (i32, i32, i32) {
    %c0_i32 = arith.constant 0 : i32
    %c0_i32_0 = arith.constant 0 : i32
    %c0_i32_1 = arith.constant 0 : i32
    return %arg0, %c0_i32, %c0_i32_0 : i32, i32, i32
  }
  func.func @transform_1(%arg0: i32) -> (i32, i32, i32) {
    %c0_i32 = arith.constant 0 : i32
    %c0_i32_0 = arith.constant 0 : i32
    %c0_i32_1 = arith.constant 0 : i32
    return %arg0, %c0_i32, %c0_i32_0 : i32, i32, i32
  }
  func.func @transform_2(%arg0: i32) -> (i32, i32, i32) {
    %c0_i32 = arith.constant 0 : i32
    %c0_i32_0 = arith.constant 0 : i32
    %c0_i32_1 = arith.constant 0 : i32
    return %arg0, %c0_i32, %c0_i32_0 : i32, i32, i32
  }
  func.func @transform_3(%arg0: i32) -> (i32, i32) {
    %c0_i32 = arith.constant 0 : i32
    %c0_i32_0 = arith.constant 0 : i32
    return %arg0, %c0_i32 : i32, i32
  }
}

</mosaic_0001>

<llo_original>
// kernel: tpu_custom_call.1
$region0: #{tpu_custom_call.1}
  #allocation0 [shape = 'u32[]', space=smem, size = 0x4, offset = 0x4, fixed_abs, tag = 'smem constant byte address 0x4 - core index']
  #allocation1 [shape = 'u32[144,128]{1,0:T(1,128)}', space=vmem, size = 0x12000, scoped, tag = 'internal scratch']
  %s0 = inlined_call_operand.hbm [shape: f32[16,256], index: 0, kind: input, shape index: {}]
  %s1 = inlined_call_operand.hbm [shape: bf16[16,256], index: 1, kind: input, shape index: {}]
  %s2 = inlined_call_operand.hbm [shape: f32[16,256], index: 2, kind: output, shape index: {0}]
  %s3 = inlined_call_operand.hbm [shape: f32[16,32], index: 3, kind: output, shape index: {1}]
  %4 = xla_tuple %s2, %s3
  %s5 = sld [smem:[#allocation0]]
  $region34: #{tpu_custom_call.1} parent=0
    _
  %s7 = ssub.s32 1, %s5
  %s8 = scalar_select 0, %s7, %s5
  $region1: #{tpu_custom_call.1} parent=0
    #allocation2 [shape = 'u8[16384]{0}', space=vmem, size = 0x4000, scoped, tag = 'input window, operand 0, single buffered']
    #allocation3 [shape = 's32[1]{0}', space=sflag, size = 0x4, scoped, tag = 'scoped memory for tpu_custom_call.1']
    #allocation4 [shape = 's32[1]{0}', space=sflag, size = 0x4, scoped, tag = 'scoped memory for tpu_custom_call.1']
    #allocation5 [shape = 'u8[8192]{0}', space=vmem, size = 0x2000, scoped, tag = 'input window, operand 1, single buffered']
    #allocation6 [shape = 's32[1]{0}', space=sflag, size = 0x4, scoped, tag = 'scoped memory for tpu_custom_call.1']
    #allocation7 [shape = 'u8[16384]{0}', space=vmem, size = 0x4000, scoped, tag = 'output window, operand 0, single buffered']
    #allocation8 [shape = 'u8[8192]{0}', space=vmem, size = 0x2000, scoped, tag = 'output window, operand 1, single buffered']
    #allocation9 [shape = 's32[1]{0}', space=sflag, size = 0x4, scoped, tag = 'scoped memory for tpu_custom_call.1']
    %9 = vsyncpa [#allocation3], 0
    %10 = vsyncpa [#allocation6], 0
    %11 = vsyncpa [#allocation4], 0
    %12 = vsyncpa [#allocation9], 0
    // Predicated region
    $region2: #{tpu_custom_call.1} parent=1 // pred_check
      _
    $region3: #{tpu_custom_call.1} parent=1 // pred_check_branch
      %14 = sbr.rel (0) target = $region5
    $region4: #{tpu_custom_call.1} parent=1 // pred_region
      %s16 = ssub.s32 512, 512
      %17 = vsyncadd [#allocation3], %s16
      %s18 = sshll.u32 [#allocation2], 4
      %s19 = int_to_ptr.vmem [resolvable:$true] %s18
      %24 = dma.hbm_to_vmem [thread:$0]  %s0, 512, %s19, [#allocation3], 256, 256, 16
    $region5: #{tpu_custom_call.1} parent=1 // pred_fallthru
      _
    // Predicated region
    $region6: #{tpu_custom_call.1} parent=1 // pred_check
      _
    $region7: #{tpu_custom_call.1} parent=1 // pred_check_branch
      %26 = sbr.rel (0) target = $region9
    $region8: #{tpu_custom_call.1} parent=1 // pred_region
      %s28 = ssub.s32 256, 256
      %29 = vsyncadd [#allocation6], %s28
      %s30 = sshll.u32 [#allocation5], 4
      %s31 = int_to_ptr.vmem [resolvable:$true] %s30
      %36 = dma.hbm_to_vmem [thread:$0]  %s1, 256, %s31, [#allocation6], 128, 128, 8
    $region9: #{tpu_custom_call.1} parent=1 // pred_fallthru
      _
    // Predicated region
    $region10: #{tpu_custom_call.1} parent=1 // pred_check
      _
    $region11: #{tpu_custom_call.1} parent=1 // pred_check_branch
      %38 = sbr.rel (0) target = $region13
    $region12: #{tpu_custom_call.1} parent=1 // pred_region
      %39 = dma.done [#allocation3], 512
    $region13: #{tpu_custom_call.1} parent=1 // pred_fallthru
      _
    // Predicated region
    $region14: #{tpu_custom_call.1} parent=1 // pred_check
      _
    $region15: #{tpu_custom_call.1} parent=1 // pred_check_branch
      %41 = sbr.rel (0) target = $region17
    $region16: #{tpu_custom_call.1} parent=1 // pred_region
      %42 = dma.done [#allocation6], 256
    $region17: #{tpu_custom_call.1} parent=1 // pred_fallthru
      _
    %v43 = vld [vmem:[#allocation2] sm:$0xff]
    %v44 = vld [vmem:[#allocation2 + $0x8] sm:$0xff]
    %v45 = vld [vmem:[#allocation2 + $0x10] sm:$0xff]
    %v46 = vld [vmem:[#allocation2 + $0x18] sm:$0xff]
    %v47 = vld [vmem:[#allocation5] sm:$0xff]
    %v48 = vld [vmem:[#allocation5 + $0x8] sm:$0xff]
    %v49 = vunpack.c.l.bf16 %v47
    %v50 = vunpack.c.h.bf16 %v47
    %v51 = vunpack.c.l.bf16 %v48
    %v52 = vunpack.c.h.bf16 %v48
    %v53 = vand.u32 2147483647, %v43
    %v54 = vand.u32 2147483647, %v44
    %v55 = vand.u32 2147483647, %v45
    %v56 = vand.u32 2147483647, %v46
    %v57 = vmul.f32 %v53, %v49
    %v58 = vmul.f32 %v54, %v50
    %v59 = vmul.f32 %v55, %v51
    %v60 = vmul.f32 %v56, %v52
    %63 = vrot.lane.b32.xlu0 %v57, 96
    %v64 = vpop.permute.xlu0 %63
    %65 = vrot.lane.b32.xlu0 %v59, 96
    %v66 = vpop.permute.xlu0 %65
    %v69 = vadd.f32 %v57, %v64
    %v70 = vadd.f32 %v59, %v66
    %73 = vrot.lane.b32.xlu0 %v49, 96
    %v74 = vpop.permute.xlu0 %73
    %75 = vrot.lane.b32.xlu0 %v51, 96
    %v76 = vpop.permute.xlu0 %75
    %v79 = vadd.f32 %v49, %v74
    %v80 = vadd.f32 %v51, %v76
    %81 = vrot.lane.b32.xlu0 %v57, 64
    %v82 = vpop.permute.xlu0 %81
    %83 = vrot.lane.b32.xlu0 %v59, 64
    %v84 = vpop.permute.xlu0 %83
    %v87 = vadd.f32 %v69, %v82
    %v88 = vadd.f32 %v70, %v84
    %89 = vrot.lane.b32.xlu0 %v49, 64
    %v90 = vpop.permute.xlu0 %89
    %91 = vrot.lane.b32.xlu0 %v51, 64
    %v92 = vpop.permute.xlu0 %91
    %v95 = vadd.f32 %v79, %v90
    %v96 = vadd.f32 %v80, %v92
    %97 = vrot.lane.b32.xlu0 %v57, 32
    %v98 = vpop.permute.xlu0 %97
    %99 = vrot.lane.b32.xlu0 %v59, 32
    %v100 = vpop.permute.xlu0 %99
    %v103 = vadd.f32 %v87, %v98
    %v104 = vadd.f32 %v88, %v100
    %105 = vrot.lane.b32.xlu0 %v49, 32
    %v106 = vpop.permute.xlu0 %105
    %107 = vrot.lane.b32.xlu0 %v51, 32
    %v108 = vpop.permute.xlu0 %107
    %v111 = vadd.f32 %v95, %v106
    %v112 = vadd.f32 %v96, %v108
    %v113 = vadd.f32 %v103, %v58
    %v114 = vadd.f32 %v104, %v60
    %v115 = vadd.f32 %v111, %v50
    %v116 = vadd.f32 %v112, %v52
    %119 = vrot.lane.b32.xlu0 %v58, 96
    %v120 = vpop.permute.xlu0 %119
    %121 = vrot.lane.b32.xlu0 %v60, 96
    %v122 = vpop.permute.xlu0 %121
    %v125 = vadd.f32 %v113, %v120
    %v126 = vadd.f32 %v114, %v122
    %129 = vrot.lane.b32.xlu0 %v50, 96
    %v130 = vpop.permute.xlu0 %129
    %131 = vrot.lane.b32.xlu0 %v52, 96
    %v132 = vpop.permute.xlu0 %131
    %v135 = vadd.f32 %v115, %v130
    %v136 = vadd.f32 %v116, %v132
    %137 = vrot.lane.b32.xlu0 %v58, 64
    %v138 = vpop.permute.xlu0 %137
    %139 = vrot.lane.b32.xlu0 %v60, 64
    %v140 = vpop.permute.xlu0 %139
    %v143 = vadd.f32 %v125, %v138
    %v144 = vadd.f32 %v126, %v140
    %145 = vrot.lane.b32.xlu0 %v50, 64
    %v146 = vpop.permute.xlu0 %145
    %147 = vrot.lane.b32.xlu0 %v52, 64
    %v148 = vpop.permute.xlu0 %147
    %v151 = vadd.f32 %v135, %v146
    %v152 = vadd.f32 %v136, %v148
    %153 = vrot.lane.b32.xlu0 %v58, 32
    %v154 = vpop.permute.xlu0 %153
    %155 = vrot.lane.b32.xlu0 %v60, 32
    %v156 = vpop.permute.xlu0 %155
    %v159 = vadd.f32 %v143, %v154
    %v160 = vadd.f32 %v144, %v156
    %161 = vrot.lane.b32.xlu0 %v50, 32
    %v162 = vpop.permute.xlu0 %161
    %163 = vrot.lane.b32.xlu0 %v52, 32
    %v164 = vpop.permute.xlu0 %163
    %v167 = vadd.f32 %v151, %v162
    %v168 = vadd.f32 %v152, %v164
    %v169 = vmax.f32 %v167, 1.0
    %v170 = vmax.f32 %v168, 1.0
    %v171 = vrcp.pop %v169
    %v172 = vmul.f32 %v159, %v171
    %v173 = vrcp.pop %v170
    %v174 = vmul.f32 %v160, %v173
    %vm175 = vcmp.eq.f32.partialorder %v172, 0.0
    %vm176 = vcmp.eq.f32.partialorder %v174, 0.0
    %v177 = vsel %vm175, 1.0, %v172
    %v178 = vsel %vm176, 1.0, %v174
    %vm179 = vcmask 261120
    %180 = vst.msk [vmem:[#allocation8] sm:$0xff] %vm179, %v177
    %181 = vst.msk [vmem:[#allocation8 + $0x8] sm:$0xff] %vm179, %v178
    %v182 = vrcp.pop %v177
    %v183 = vrcp.pop %v178
    %186 = vrot.lane.b32.xlu0 %v182, 32
    %v187 = vpop.permute.xlu0 %186
    %188 = vrot.lane.b32.xlu0 %v183, 32
    %v189 = vpop.permute.xlu0 %188
    %192 = vrot.lane.b32.xlu0 %v182, 64
    %v193 = vpop.permute.xlu0 %192
    %194 = vrot.lane.b32.xlu0 %v183, 64
    %v195 = vpop.permute.xlu0 %194
    %198 = vrot.lane.b32.xlu0 %v182, 96
    %v199 = vpop.permute.xlu0 %198
    %200 = vrot.lane.b32.xlu0 %v183, 96
    %v201 = vpop.permute.xlu0 %200
    %v204 = vsel %vm179, %v182, %v187
    %v205 = vsel %vm179, %v183, %v189
    %vm206 = vcmask 523264
    %v207 = vsel %vm206, %v204, %v193
    %v208 = vsel %vm206, %v205, %v195
    %vm209 = vcmask 785408
    %v210 = vsel %vm209, %v207, %v199
    %v211 = vsel %vm209, %v208, %v201
    %v212 = vmul.f32 %v43, %v210
    %v213 = vmul.f32 %v44, %v210
    %v214 = vmul.f32 %v45, %v211
    %v215 = vmul.f32 %v46, %v211
    %216 = vst [vmem:[#allocation7] sm:$0xff] %v212
    %217 = vst [vmem:[#allocation7 + $0x8] sm:$0xff] %v213
    %218 = vst [vmem:[#allocation7 + $0x10] sm:$0xff] %v214
    %219 = vst [vmem:[#allocation7 + $0x18] sm:$0xff] %v215
    // Predicated region
    $region18: #{tpu_custom_call.1} parent=1 // pred_check
      _
    $region19: #{tpu_custom_call.1} parent=1 // pred_check_branch
      %221 = sbr.rel (0) target = $region21
    $region20: #{tpu_custom_call.1} parent=1 // pred_region
      %s223 = ssub.s32 512, 512
      %224 = vsyncadd [#allocation4], %s223
      %s225 = sshll.u32 [#allocation7], 4
      %s226 = int_to_ptr.vmem [resolvable:$true] %s225
      %231 = dma.vmem_to_hbm [thread:$0]  %s226, 512, %s2, [#allocation4], 256, 256, 16
    $region21: #{tpu_custom_call.1} parent=1 // pred_fallthru
      _
    // Predicated region
    $region22: #{tpu_custom_call.1} parent=1 // pred_check
      _
    $region23: #{tpu_custom_call.1} parent=1 // pred_check_branch
      %233 = sbr.rel (0) target = $region25
    $region24: #{tpu_custom_call.1} parent=1 // pred_region
      %s235 = ssub.s32 256, 256
      %236 = vsyncadd [#allocation9], %s235
      %s237 = sshll.u32 [#allocation8], 4
      %s238 = int_to_ptr.vmem [resolvable:$true] %s237
      %243 = dma.vmem_to_hbm [thread:$0]  %s238, 256, %s3, [#allocation9], 128, 128, 8
    $region25: #{tpu_custom_call.1} parent=1 // pred_fallthru
      _
    // Predicated region
    $region26: #{tpu_custom_call.1} parent=1 // pred_check
      _
    $region27: #{tpu_custom_call.1} parent=1 // pred_check_branch
      %245 = sbr.rel (0) target = $region29
    $region28: #{tpu_custom_call.1} parent=1 // pred_region
      %246 = dma.done [#allocation4], 512
    $region29: #{tpu_custom_call.1} parent=1 // pred_fallthru
      _
    // Predicated region
    $region30: #{tpu_custom_call.1} parent=1 // pred_check
      _
    $region31: #{tpu_custom_call.1} parent=1 // pred_check_branch
      %248 = sbr.rel (0) target = $region33
    $region32: #{tpu_custom_call.1} parent=1 // pred_region
      %249 = dma.done [#allocation9], 256
    $region33: #{tpu_custom_call.1} parent=1 // pred_fallthru
      _
    %250 = vsyncpa [#allocation3], 1
    %251 = vsyncpa [#allocation6], 1
    %252 = vsyncpa [#allocation4], 1
    %253 = vsyncpa [#allocation9], 1

// kernel: tpu_custom_call.1
$region0: #{tpu_custom_call.1}
  #allocation0 [shape = 'u32[]', space=smem, size = 0x4, offset = 0x4, fixed_abs, tag = 'smem constant byte address 0x4 - core index']
  #allocation1 [shape = 'u32[144,128]{1,0:T(1,128)}', space=vmem, size = 0x12000, scoped, tag = 'internal scratch']
  %s0 = inlined_call_operand.hbm [shape: f32[16,8,32], index: 0, kind: input, shape index: {}]
  %s1 = inlined_call_operand.hbm [shape: bf16[16,8,32], index: 1, kind: input, shape index: {}]
  %s2 = inlined_call_operand.hbm [shape: f32[16,8,32], index: 2, kind: output, shape index: {0}]
  %s3 = inlined_call_operand.hbm [shape: f32[16,32], index: 3, kind: output, shape index: {1}]
  %4 = xla_tuple %s2, %s3
  %s5 = sld [smem:[#allocation0]]
  $region34: #{tpu_custom_call.1} parent=0
    _
  %s7 = ssub.s32 1, %s5
  %s8 = scalar_select 0, %s7, %s5
  $region1: #{tpu_custom_call.1} parent=0
    #allocation2 [shape = 'u8[65536]{0}', space=vmem, size = 0x10000, scoped, tag = 'input window, operand 0, single buffered']
    #allocation3 [shape = 's32[1]{0}', space=sflag, size = 0x4, scoped, tag = 'scoped memory for tpu_custom_call.1']
    #allocation4 [shape = 's32[1]{0}', space=sflag, size = 0x4, scoped, tag = 'scoped memory for tpu_custom_call.1']
    #allocation5 [shape = 'u8[32768]{0}', space=vmem, size = 0x8000, scoped, tag = 'input window, operand 1, single buffered']
    #allocation6 [shape = 's32[1]{0}', space=sflag, size = 0x4, scoped, tag = 'scoped memory for tpu_custom_call.1']
    #allocation7 [shape = 'u8[65536]{0}', space=vmem, size = 0x10000, scoped, tag = 'output window, operand 0, single buffered']
    #allocation8 [shape = 'u8[8192]{0}', space=vmem, size = 0x2000, scoped, tag = 'output window, operand 1, single buffered']
    #allocation9 [shape = 's32[1]{0}', space=sflag, size = 0x4, scoped, tag = 'scoped memory for tpu_custom_call.1']
    %9 = vsyncpa [#allocation3], 0
    %10 = vsyncpa [#allocation6], 0
    %11 = vsyncpa [#allocation4], 0
    %12 = vsyncpa [#allocation9], 0
    // Predicated region
    $region2: #{tpu_custom_call.1} parent=1 // pred_check
      _
    $region3: #{tpu_custom_call.1} parent=1 // pred_check_branch
      %14 = sbr.rel (0) target = $region5
    $region4: #{tpu_custom_call.1} parent=1 // pred_region
      %s16 = ssub.s32 2048, 2048
      %17 = vsyncadd [#allocation3], %s16
      %s18 = sshll.u32 [#allocation2], 4
      %s19 = int_to_ptr.vmem [resolvable:$true] %s18
      %24 = dma.hbm_to_vmem [thread:$0]  %s0, 2048, %s19, [#allocation3], 128, 128, 8
    $region5: #{tpu_custom_call.1} parent=1 // pred_fallthru
      _
    // Predicated region
    $region6: #{tpu_custom_call.1} parent=1 // pred_check
      _
    $region7: #{tpu_custom_call.1} parent=1 // pred_check_branch
      %26 = sbr.rel (0) target = $region9
    $region8: #{tpu_custom_call.1} parent=1 // pred_region
      %s28 = ssub.s32 1024, 1024
      %29 = vsyncadd [#allocation6], %s28
      %s30 = sshll.u32 [#allocation5], 4
      %s31 = int_to_ptr.vmem [resolvable:$true] %s30
      %36 = dma.hbm_to_vmem [thread:$0]  %s1, 1024, %s31, [#allocation6], 64, 64, 4
    $region9: #{tpu_custom_call.1} parent=1 // pred_fallthru
      _
    // Predicated region
    $region10: #{tpu_custom_call.1} parent=1 // pred_check
      _
    $region11: #{tpu_custom_call.1} parent=1 // pred_check_branch
      %38 = sbr.rel (0) target = $region13
    $region12: #{tpu_custom_call.1} parent=1 // pred_region
      %39 = dma.done [#allocation3], 2048
    $region13: #{tpu_custom_call.1} parent=1 // pred_fallthru
      _
    // Predicated region
    $region14: #{tpu_custom_call.1} parent=1 // pred_check
      _
    $region15: #{tpu_custom_call.1} parent=1 // pred_check_branch
      %41 = sbr.rel (0) target = $region17
    $region16: #{tpu_custom_call.1} parent=1 // pred_region
      %42 = dma.done [#allocation6], 1024
    $region17: #{tpu_custom_call.1} parent=1 // pred_fallthru
      _
    %v43 = vld [vmem:[#allocation2] sm:$0xff]
    %v44 = vld [vmem:[#allocation2 + $0x8] sm:$0xff]
    %v45 = vld [vmem:[#allocation2 + $0x10] sm:$0xff]
    %v46 = vld [vmem:[#allocation2 + $0x18] sm:$0xff]
    %v47 = vld [vmem:[#allocation2 + $0x20] sm:$0xff]
    %v48 = vld [vmem:[#allocation2 + $0x28] sm:$0xff]
    %v49 = vld [vmem:[#allocation2 + $0x30] sm:$0xff]
    %v50 = vld [vmem:[#allocation2 + $0x38] sm:$0xff]
    %v51 = vld [vmem:[#allocation2 + $0x40] sm:$0xff]
    %v52 = vld [vmem:[#allocation2 + $0x48] sm:$0xff]
    %v53 = vld [vmem:[#allocation2 + $0x50] sm:$0xff]
    %v54 = vld [vmem:[#allocation2 + $0x58] sm:$0xff]
    %v55 = vld [vmem:[#allocation2 + $0x60] sm:$0xff]
    %v56 = vld [vmem:[#allocation2 + $0x68] sm:$0xff]
    %v57 = vld [vmem:[#allocation2 + $0x70] sm:$0xff]
    %v58 = vld [vmem:[#allocation2 + $0x78] sm:$0xff]
    %v59 = vld [vmem:[#allocation5] sm:$0xf]
    %v60 = vld [vmem:[#allocation5 + $0x4] sm:$0xf]
    %v61 = vld [vmem:[#allocation5 + $0x8] sm:$0xf]
    %v62 = vld [vmem:[#allocation5 + $0xc] sm:$0xf]
    %v63 = vld [vmem:[#allocation5 + $0x10] sm:$0xf]
    %v64 = vld [vmem:[#allocation5 + $0x14] sm:$0xf]
    %v65 = vld [vmem:[#allocation5 + $0x18] sm:$0xf]
    %v66 = vld [vmem:[#allocation5 + $0x1c] sm:$0xf]
    %v67 = vld [vmem:[#allocation5 + $0x20] sm:$0xf]
    %v68 = vld [vmem:[#allocation5 + $0x24] sm:$0xf]
    %v69 = vld [vmem:[#allocation5 + $0x28] sm:$0xf]
    %v70 = vld [vmem:[#allocation5 + $0x2c] sm:$0xf]
    %v71 = vld [vmem:[#allocation5 + $0x30] sm:$0xf]
    %v72 = vld [vmem:[#allocation5 + $0x34] sm:$0xf]
    %v73 = vld [vmem:[#allocation5 + $0x38] sm:$0xf]
    %v74 = vld [vmem:[#allocation5 + $0x3c] sm:$0xf]
    %v75 = vunpack.c.l.bf16 %v59
    %v76 = vunpack.c.l.bf16 %v60
    %v77 = vunpack.c.l.bf16 %v61
    %v78 = vunpack.c.l.bf16 %v62
    %v79 = vunpack.c.l.bf16 %v63
    %v80 = vunpack.c.l.bf16 %v64
    %v81 = vunpack.c.l.bf16 %v65
    %v82 = vunpack.c.l.bf16 %v66
    %v83 = vunpack.c.l.bf16 %v67
    %v84 = vunpack.c.l.bf16 %v68
    %v85 = vunpack.c.l.bf16 %v69
    %v86 = vunpack.c.l.bf16 %v70
    %v87 = vunpack.c.l.bf16 %v71
    %v88 = vunpack.c.l.bf16 %v72
    %v89 = vunpack.c.l.bf16 %v73
    %v90 = vunpack.c.l.bf16 %v74
    %v91 = vand.u32 2147483647, %v43
    %v92 = vand.u32 2147483647, %v44
    %v93 = vand.u32 2147483647, %v45
    %v94 = vand.u32 2147483647, %v46
    %v95 = vand.u32 2147483647, %v47
    %v96 = vand.u32 2147483647, %v48
    %v97 = vand.u32 2147483647, %v49
    %v98 = vand.u32 2147483647, %v50
    %v99 = vand.u32 2147483647, %v51
    %v100 = vand.u32 2147483647, %v52
    %v101 = vand.u32 2147483647, %v53
    %v102 = vand.u32 2147483647, %v54
    %v103 = vand.u32 2147483647, %v55
    %v104 = vand.u32 2147483647, %v56
    %v105 = vand.u32 2147483647, %v57
    %v106 = vand.u32 2147483647, %v58
    %v107 = vmul.f32 %v91, %v75
    %v108 = vmul.f32 %v92, %v76
    %v109 = vmul.f32 %v93, %v77
    %v110 = vmul.f32 %v94, %v78
    %v111 = vmul.f32 %v95, %v79
    %v112 = vmul.f32 %v96, %v80
    %v113 = vmul.f32 %v97, %v81
    %v114 = vmul.f32 %v98, %v82
    %v115 = vmul.f32 %v99, %v83
    %v116 = vmul.f32 %v100, %v84
    %v117 = vmul.f32 %v101, %v85
    %v118 = vmul.f32 %v102, %v86
    %v119 = vmul.f32 %v103, %v87
    %v120 = vmul.f32 %v104, %v88
    %v121 = vmul.f32 %v105, %v89
    %v122 = vmul.f32 %v106, %v90
    %vm123 = vcmask 261120
    %v124 = vsel %vm123, %v107, 0.0
    %v125 = vrot.slane %v124, 4
    %v126 = vadd.f32 %v124, %v125
    %v127 = vrot.slane %v126, 2
    %v128 = vadd.f32 %v126, %v127
    %v129 = vrot.slane %v128, 1
    %v130 = vadd.f32 %v128, %v129
    %v131 = vsel %vm123, %v108, 0.0
    %v132 = vrot.slane %v131, 4
    %v133 = vadd.f32 %v131, %v132
    %v134 = vrot.slane %v133, 2
    %v135 = vadd.f32 %v133, %v134
    %v136 = vrot.slane %v135, 1
    %v137 = vadd.f32 %v135, %v136
    %v138 = vsel %vm123, %v109, 0.0
    %v139 = vrot.slane %v138, 4
    %v140 = vadd.f32 %v138, %v139
    %v141 = vrot.slane %v140, 2
    %v142 = vadd.f32 %v140, %v141
    %v143 = vrot.slane %v142, 1
    %v144 = vadd.f32 %v142, %v143
    %v145 = vsel %vm123, %v110, 0.0
    %v146 = vrot.slane %v145, 4
    %v147 = vadd.f32 %v145, %v146
    %v148 = vrot.slane %v147, 2
    %v149 = vadd.f32 %v147, %v148
    %v150 = vrot.slane %v149, 1
    %v151 = vadd.f32 %v149, %v150
    %v152 = vsel %vm123, %v111, 0.0
    %v153 = vrot.slane %v152, 4
    %v154 = vadd.f32 %v152, %v153
    %v155 = vrot.slane %v154, 2
    %v156 = vadd.f32 %v154, %v155
    %v157 = vrot.slane %v156, 1
    %v158 = vadd.f32 %v156, %v157
    %v159 = vsel %vm123, %v112, 0.0
    %v160 = vrot.slane %v159, 4
    %v161 = vadd.f32 %v159, %v160
    %v162 = vrot.slane %v161, 2
    %v163 = vadd.f32 %v161, %v162
    %v164 = vrot.slane %v163, 1
    %v165 = vadd.f32 %v163, %v164
    %v166 = vsel %vm123, %v113, 0.0
    %v167 = vrot.slane %v166, 4
    %v168 = vadd.f32 %v166, %v167
    %v169 = vrot.slane %v168, 2
    %v170 = vadd.f32 %v168, %v169
    %v171 = vrot.slane %v170, 1
    %v172 = vadd.f32 %v170, %v171
    %v173 = vsel %vm123, %v114, 0.0
    %v174 = vrot.slane %v173, 4
    %v175 = vadd.f32 %v173, %v174
    %v176 = vrot.slane %v175, 2
    %v177 = vadd.f32 %v175, %v176
    %v178 = vrot.slane %v177, 1
    %v179 = vadd.f32 %v177, %v178
    %v180 = vsel %vm123, %v115, 0.0
    %v181 = vrot.slane %v180, 4
    %v182 = vadd.f32 %v180, %v181
    %v183 = vrot.slane %v182, 2
    %v184 = vadd.f32 %v182, %v183
    %v185 = vrot.slane %v184, 1
    %v186 = vadd.f32 %v184, %v185
    %v187 = vsel %vm123, %v116, 0.0
    %v188 = vrot.slane %v187, 4
    %v189 = vadd.f32 %v187, %v188
    %v190 = vrot.slane %v189, 2
    %v191 = vadd.f32 %v189, %v190
    %v192 = vrot.slane %v191, 1
    %v193 = vadd.f32 %v191, %v192
    %v194 = vsel %vm123, %v117, 0.0
    %v195 = vrot.slane %v194, 4
    %v196 = vadd.f32 %v194, %v195
    %v197 = vrot.slane %v196, 2
    %v198 = vadd.f32 %v196, %v197
    %v199 = vrot.slane %v198, 1
    %v200 = vadd.f32 %v198, %v199
    %v201 = vsel %vm123, %v118, 0.0
    %v202 = vrot.slane %v201, 4
    %v203 = vadd.f32 %v201, %v202
    %v204 = vrot.slane %v203, 2
    %v205 = vadd.f32 %v203, %v204
    %v206 = vrot.slane %v205, 1
    %v207 = vadd.f32 %v205, %v206
    %v208 = vsel %vm123, %v119, 0.0
    %v209 = vrot.slane %v208, 4
    %v210 = vadd.f32 %v208, %v209
    %v211 = vrot.slane %v210, 2
    %v212 = vadd.f32 %v210, %v211
    %v213 = vrot.slane %v212, 1
    %v214 = vadd.f32 %v212, %v213
    %v215 = vsel %vm123, %v120, 0.0
    %v216 = vrot.slane %v215, 4
    %v217 = vadd.f32 %v215, %v216
    %v218 = vrot.slane %v217, 2
    %v219 = vadd.f32 %v217, %v218
    %v220 = vrot.slane %v219, 1
    %v221 = vadd.f32 %v219, %v220
    %v222 = vsel %vm123, %v121, 0.0
    %v223 = vrot.slane %v222, 4
    %v224 = vadd.f32 %v222, %v223
    %v225 = vrot.slane %v224, 2
    %v226 = vadd.f32 %v224, %v225
    %v227 = vrot.slane %v226, 1
    %v228 = vadd.f32 %v226, %v227
    %v229 = vsel %vm123, %v122, 0.0
    %v230 = vrot.slane %v229, 4
    %v231 = vadd.f32 %v229, %v230
    %v232 = vrot.slane %v231, 2
    %v233 = vadd.f32 %v231, %v232
    %v234 = vrot.slane %v233, 1
    %v235 = vadd.f32 %v233, %v234
    %v236 = vsel %vm123, %v75, 0.0
    %v237 = vrot.slane %v236, 4
    %v238 = vadd.f32 %v236, %v237
    %v239 = vrot.slane %v238, 2
    %v240 = vadd.f32 %v238, %v239
    %v241 = vrot.slane %v240, 1
    %v242 = vadd.f32 %v240, %v241
    %v243 = vsel %vm123, %v76, 0.0
    %v244 = vrot.slane %v243, 4
    %v245 = vadd.f32 %v243, %v244
    %v246 = vrot.slane %v245, 2
    %v247 = vadd.f32 %v245, %v246
    %v248 = vrot.slane %v247, 1
    %v249 = vadd.f32 %v247, %v248
    %v250 = vsel %vm123, %v77, 0.0
    %v251 = vrot.slane %v250, 4
    %v252 = vadd.f32 %v250, %v251
    %v253 = vrot.slane %v252, 2
    %v254 = vadd.f32 %v252, %v253
    %v255 = vrot.slane %v254, 1
    %v256 = vadd.f32 %v254, %v255
    %v257 = vsel %vm123, %v78, 0.0
    %v258 = vrot.slane %v257, 4
    %v259 = vadd.f32 %v257, %v258
    %v260 = vrot.slane %v259, 2
    %v261 = vadd.f32 %v259, %v260
    %v262 = vrot.slane %v261, 1
    %v263 = vadd.f32 %v261, %v262
    %v264 = vsel %vm123, %v79, 0.0
    %v265 = vrot.slane %v264, 4
    %v266 = vadd.f32 %v264, %v265
    %v267 = vrot.slane %v266, 2
    %v268 = vadd.f32 %v266, %v267
    %v269 = vrot.slane %v268, 1
    %v270 = vadd.f32 %v268, %v269
    %v271 = vsel %vm123, %v80, 0.0
    %v272 = vrot.slane %v271, 4
    %v273 = vadd.f32 %v271, %v272
    %v274 = vrot.slane %v273, 2
    %v275 = vadd.f32 %v273, %v274
    %v276 = vrot.slane %v275, 1
    %v277 = vadd.f32 %v275, %v276
    %v278 = vsel %vm123, %v81, 0.0
    %v279 = vrot.slane %v278, 4
    %v280 = vadd.f32 %v278, %v279
    %v281 = vrot.slane %v280, 2
    %v282 = vadd.f32 %v280, %v281
    %v283 = vrot.slane %v282, 1
    %v284 = vadd.f32 %v282, %v283
    %v285 = vsel %vm123, %v82, 0.0
    %v286 = vrot.slane %v285, 4
    %v287 = vadd.f32 %v285, %v286
    %v288 = vrot.slane %v287, 2
    %v289 = vadd.f32 %v287, %v288
    %v290 = vrot.slane %v289, 1
    %v291 = vadd.f32 %v289, %v290
    %v292 = vsel %vm123, %v83, 0.0
    %v293 = vrot.slane %v292, 4
    %v294 = vadd.f32 %v292, %v293
    %v295 = vrot.slane %v294, 2
    %v296 = vadd.f32 %v294, %v295
    %v297 = vrot.slane %v296, 1
    %v298 = vadd.f32 %v296, %v297
    %v299 = vsel %vm123, %v84, 0.0
    %v300 = vrot.slane %v299, 4
    %v301 = vadd.f32 %v299, %v300
    %v302 = vrot.slane %v301, 2
    %v303 = vadd.f32 %v301, %v302
    %v304 = vrot.slane %v303, 1
    %v305 = vadd.f32 %v303, %v304
    %v306 = vsel %vm123, %v85, 0.0
    %v307 = vrot.slane %v306, 4
    %v308 = vadd.f32 %v306, %v307
    %v309 = vrot.slane %v308, 2
    %v310 = vadd.f32 %v308, %v309
    %v311 = vrot.slane %v310, 1
    %v312 = vadd.f32 %v310, %v311
    %v313 = vsel %vm123, %v86, 0.0
    %v314 = vrot.slane %v313, 4
    %v315 = vadd.f32 %v313, %v314
    %v316 = vrot.slane %v315, 2
    %v317 = vadd.f32 %v315, %v316
    %v318 = vrot.slane %v317, 1
    %v319 = vadd.f32 %v317, %v318
    %v320 = vsel %vm123, %v87, 0.0
    %v321 = vrot.slane %v320, 4
    %v322 = vadd.f32 %v320, %v321
    %v323 = vrot.slane %v322, 2
    %v324 = vadd.f32 %v322, %v323
    %v325 = vrot.slane %v324, 1
    %v326 = vadd.f32 %v324, %v325
    %v327 = vsel %vm123, %v88, 0.0
    %v328 = vrot.slane %v327, 4
    %v329 = vadd.f32 %v327, %v328
    %v330 = vrot.slane %v329, 2
    %v331 = vadd.f32 %v329, %v330
    %v332 = vrot.slane %v331, 1
    %v333 = vadd.f32 %v331, %v332
    %v334 = vsel %vm123, %v89, 0.0
    %v335 = vrot.slane %v334, 4
    %v336 = vadd.f32 %v334, %v335
    %v337 = vrot.slane %v336, 2
    %v338 = vadd.f32 %v336, %v337
    %v339 = vrot.slane %v338, 1
    %v340 = vadd.f32 %v338, %v339
    %v341 = vsel %vm123, %v90, 0.0
    %v342 = vrot.slane %v341, 4
    %v343 = vadd.f32 %v341, %v342
    %v344 = vrot.slane %v343, 2
    %v345 = vadd.f32 %v343, %v344
    %v346 = vrot.slane %v345, 1
    %v347 = vadd.f32 %v345, %v346
    %v348 = vmax.f32 %v242, 1.0
    %v349 = vmax.f32 %v249, 1.0
    %v350 = vmax.f32 %v256, 1.0
    %v351 = vmax.f32 %v263, 1.0
    %v352 = vmax.f32 %v270, 1.0
    %v353 = vmax.f32 %v277, 1.0
    %v354 = vmax.f32 %v284, 1.0
    %v355 = vmax.f32 %v291, 1.0
    %v356 = vmax.f32 %v298, 1.0
    %v357 = vmax.f32 %v305, 1.0
    %v358 = vmax.f32 %v312, 1.0
    %v359 = vmax.f32 %v319, 1.0
    %v360 = vmax.f32 %v326, 1.0
    %v361 = vmax.f32 %v333, 1.0
    %v362 = vmax.f32 %v340, 1.0
    %v363 = vmax.f32 %v347, 1.0
    %v364 = vrcp.pop %v348
    %v365 = vmul.f32 %v130, %v364
    %v366 = vrcp.pop %v349
    %v367 = vmul.f32 %v137, %v366
    %v368 = vrcp.pop %v350
    %v369 = vmul.f32 %v144, %v368
    %v370 = vrcp.pop %v351
    %v371 = vmul.f32 %v151, %v370
    %v372 = vrcp.pop %v352
    %v373 = vmul.f32 %v158, %v372
    %v374 = vrcp.pop %v353
    %v375 = vmul.f32 %v165, %v374
    %v376 = vrcp.pop %v354
    %v377 = vmul.f32 %v172, %v376
    %v378 = vrcp.pop %v355
    %v379 = vmul.f32 %v179, %v378
    %v380 = vrcp.pop %v356
    %v381 = vmul.f32 %v186, %v380
    %v382 = vrcp.pop %v357
    %v383 = vmul.f32 %v193, %v382
    %v384 = vrcp.pop %v358
    %v385 = vmul.f32 %v200, %v384
    %v386 = vrcp.pop %v359
    %v387 = vmul.f32 %v207, %v386
    %v388 = vrcp.pop %v360
    %v389 = vmul.f32 %v214, %v388
    %v390 = vrcp.pop %v361
    %v391 = vmul.f32 %v221, %v390
    %v392 = vrcp.pop %v362
    %v393 = vmul.f32 %v228, %v392
    %v394 = vrcp.pop %v363
    %v395 = vmul.f32 %v235, %v394
    %vm396 = vcmp.eq.f32.partialorder %v365, 0.0
    %vm397 = vcmp.eq.f32.partialorder %v367, 0.0
    %vm398 = vcmp.eq.f32.partialorder %v369, 0.0
    %vm399 = vcmp.eq.f32.partialorder %v371, 0.0
    %vm400 = vcmp.eq.f32.partialorder %v373, 0.0
    %vm401 = vcmp.eq.f32.partialorder %v375, 0.0
    %vm402 = vcmp.eq.f32.partialorder %v377, 0.0
    %vm403 = vcmp.eq.f32.partialorder %v379, 0.0
    %vm404 = vcmp.eq.f32.partialorder %v381, 0.0
    %vm405 = vcmp.eq.f32.partialorder %v383, 0.0
    %vm406 = vcmp.eq.f32.partialorder %v385, 0.0
    %vm407 = vcmp.eq.f32.partialorder %v387, 0.0
    %vm408 = vcmp.eq.f32.partialorder %v389, 0.0
    %vm409 = vcmp.eq.f32.partialorder %v391, 0.0
    %vm410 = vcmp.eq.f32.partialorder %v393, 0.0
    %vm411 = vcmp.eq.f32.partialorder %v395, 0.0
    %v412 = vsel %vm396, 1.0, %v365
    %v413 = vsel %vm397, 1.0, %v367
    %v414 = vsel %vm398, 1.0, %v369
    %v415 = vsel %vm399, 1.0, %v371
    %v416 = vsel %vm400, 1.0, %v373
    %v417 = vsel %vm401, 1.0, %v375
    %v418 = vsel %vm402, 1.0, %v377
    %v419 = vsel %vm403, 1.0, %v379
    %v420 = vsel %vm404, 1.0, %v381
    %v421 = vsel %vm405, 1.0, %v383
    %v422 = vsel %vm406, 1.0, %v385
    %v423 = vsel %vm407, 1.0, %v387
    %v424 = vsel %vm408, 1.0, %v389
    %v425 = vsel %vm409, 1.0, %v391
    %v426 = vsel %vm410, 1.0, %v393
    %v427 = vsel %vm411, 1.0, %v395
    %vm444 = vcmask 1041409
    %v445 = vsel %vm444, %v413, %v412
    %vm446 = vcmask 1042434
    %v447 = vsel %vm446, %v414, %v445
    %vm448 = vcmask 1043459
    %v449 = vsel %vm448, %v415, %v447
    %vm450 = vcmask 1044484
    %v451 = vsel %vm450, %v416, %v449
    %vm452 = vcmask 1045509
    %v453 = vsel %vm452, %v417, %v451
    %vm454 = vcmask 1046534
    %v455 = vsel %vm454, %v418, %v453
    %vm456 = vcmask 1047559
    %v457 = vsel %vm456, %v419, %v455
    %v458 = vsel %vm444, %v421, %v420
    %v459 = vsel %vm446, %v422, %v458
    %v460 = vsel %vm448, %v423, %v459
    %v461 = vsel %vm450, %v424, %v460
    %v462 = vsel %vm452, %v425, %v461
    %v463 = vsel %vm454, %v426, %v462
    %v464 = vsel %vm456, %v427, %v463
    %467 = vst.msk [vmem:[#allocation8] sm:$0xff] %vm123, %v457
    %468 = vst.msk [vmem:[#allocation8 + $0x8] sm:$0xff] %vm123, %v464
    %v469 = vrcp.pop %v412
    %v470 = vrcp.pop %v413
    %v471 = vrcp.pop %v414
    %v472 = vrcp.pop %v415
    %v473 = vrcp.pop %v416
    %v474 = vrcp.pop %v417
    %v475 = vrcp.pop %v418
    %v476 = vrcp.pop %v419
    %v477 = vrcp.pop %v420
    %v478 = vrcp.pop %v421
    %v479 = vrcp.pop %v422
    %v480 = vrcp.pop %v423
    %v481 = vrcp.pop %v424
    %v482 = vrcp.pop %v425
    %v483 = vrcp.pop %v426
    %v484 = vrcp.pop %v427
    %v485 = vmul.f32 %v43, %v469
    %v486 = vmul.f32 %v44, %v470
    %v487 = vmul.f32 %v45, %v471
    %v488 = vmul.f32 %v46, %v472
    %v489 = vmul.f32 %v47, %v473
    %v490 = vmul.f32 %v48, %v474
    %v491 = vmul.f32 %v49, %v475
    %v492 = vmul.f32 %v50, %v476
    %v493 = vmul.f32 %v51, %v477
    %v494 = vmul.f32 %v52, %v478
    %v495 = vmul.f32 %v53, %v479
    %v496 = vmul.f32 %v54, %v480
    %v497 = vmul.f32 %v55, %v481
    %v498 = vmul.f32 %v56, %v482
    %v499 = vmul.f32 %v57, %v483
    %v500 = vmul.f32 %v58, %v484
    %501 = vst.msk [vmem:[#allocation7] sm:$0xff] %vm123, %v485
    %502 = vst.msk [vmem:[#allocation7 + $0x8] sm:$0xff] %vm123, %v486
    %503 = vst.msk [vmem:[#allocation7 + $0x10] sm:$0xff] %vm123, %v487
    %504 = vst.msk [vmem:[#allocation7 + $0x18] sm:$0xff] %vm123, %v488
    %505 = vst.msk [vmem:[#allocation7 + $0x20] sm:$0xff] %vm123, %v489
    %506 = vst.msk [vmem:[#allocation7 + $0x28] sm:$0xff] %vm123, %v490
    %507 = vst.msk [vmem:[#allocation7 + $0x30] sm:$0xff] %vm123, %v491
    %508 = vst.msk [vmem:[#allocation7 + $0x38] sm:$0xff] %vm123, %v492
    %509 = vst.msk [vmem:[#allocation7 + $0x40] sm:$0xff] %vm123, %v493
    %510 = vst.msk [vmem:[#allocation7 + $0x48] sm:$0xff] %vm123, %v494
    %511 = vst.msk [vmem:[#allocation7 + $0x50] sm:$0xff] %vm123, %v495
    %512 = vst.msk [vmem:[#allocation7 + $0x58] sm:$0xff] %vm123, %v496
    %513 = vst.msk [vmem:[#allocation7 + $0x60] sm:$0xff] %vm123, %v497
    %514 = vst.msk [vmem:[#allocation7 + $0x68] sm:$0xff] %vm123, %v498
    %515 = vst.msk [vmem:[#allocation7 + $0x70] sm:$0xff] %vm123, %v499
    %516 = vst.msk [vmem:[#allocation7 + $0x78] sm:$0xff] %vm123, %v500
    // Predicated region
    $region18: #{tpu_custom_call.1} parent=1 // pred_check
      _
    $region19: #{tpu_custom_call.1} parent=1 // pred_check_branch
      %518 = sbr.rel (0) target = $region21
    $region20: #{tpu_custom_call.1} parent=1 // pred_region
      %s520 = ssub.s32 2048, 2048
      %521 = vsyncadd [#allocation4], %s520
      %s522 = sshll.u32 [#allocation7], 4
      %s523 = int_to_ptr.vmem [resolvable:$true] %s522
      %528 = dma.vmem_to_hbm [thread:$0]  %s523, 2048, %s2, [#allocation4], 128, 128, 8
    $region21: #{tpu_custom_call.1} parent=1 // pred_fallthru
      _
    // Predicated region
    $region22: #{tpu_custom_call.1} parent=1 // pred_check
      _
    $region23: #{tpu_custom_call.1} parent=1 // pred_check_branch
      %530 = sbr.rel (0) target = $region25
    $region24: #{tpu_custom_call.1} parent=1 // pred_region
      %s532 = ssub.s32 256, 256
      %533 = vsyncadd [#allocation9], %s532
      %s534 = sshll.u32 [#allocation8], 4
      %s535 = int_to_ptr.vmem [resolvable:$true] %s534
      %540 = dma.vmem_to_hbm [thread:$0]  %s535, 256, %s3, [#allocation9], 128, 128, 8
    $region25: #{tpu_custom_call.1} parent=1 // pred_fallthru
      _
    // Predicated region
    $region26: #{tpu_custom_call.1} parent=1 // pred_check
      _
    $region27: #{tpu_custom_call.1} parent=1 // pred_check_branch
      %542 = sbr.rel (0) target = $region29
    $region28: #{tpu_custom_call.1} parent=1 // pred_region
      %543 = dma.done [#allocation4], 2048
    $region29: #{tpu_custom_call.1} parent=1 // pred_fallthru
      _
    // Predicated region
    $region30: #{tpu_custom_call.1} parent=1 // pred_check
      _
    $region31: #{tpu_custom_call.1} parent=1 // pred_check_branch
      %545 = sbr.rel (0) target = $region33
    $region32: #{tpu_custom_call.1} parent=1 // pred_region
      %546 = dma.done [#allocation9], 256
    $region33: #{tpu_custom_call.1} parent=1 // pred_fallthru
      _
    %547 = vsyncpa [#allocation3], 1
    %548 = vsyncpa [#allocation6], 1
    %549 = vsyncpa [#allocation4], 1
    %550 = vsyncpa [#allocation9], 1

</llo_original>
